<compile_context>
chip_gen: v7x
topology: tpu7x:2x2x1
jax: 0.10.0
libtpu: 0.0.40
codegen_flags: <defaults>
</compile_context>

<pallas_src>
import jax
import jax.numpy as jnp
from jax.experimental import pallas as pl
from jax.experimental.pallas import tpu as pltpu


# ---------------------------------------------------------------------------
# Kernels
# ---------------------------------------------------------------------------
def _softmax_stable_single_kernel(x_ref, o_ref):
    """Whole array resident in VMEM: one pass computes max, exp, sum, scale."""
    x = x_ref[...].astype(jnp.float32)
    m = jnp.max(x)                                # global max (scalar)
    e = jnp.exp(x - m)
    denom = jnp.sum(e, axis=0, keepdims=True)     # (1, cols): sum() over dim-0 slices
    inv = pl.reciprocal(denom)                    # exact recip, then VPU multiply
    o_ref[...] = (e * inv).astype(o_ref.dtype)


def _softmax_stable_tiled_kernel(gmax_ref, x_ref, o_ref):
    """One column tile: out = exp(x - gmax) * (1 / sum_axis0(exp(x - gmax)))."""
    x = x_ref[...].astype(jnp.float32)
    e = jnp.exp(x - gmax_ref[0])                  # global max: SMEM scalar (hoisted)
    denom = jnp.sum(e, axis=0, keepdims=True)     # (1, TN)
    inv = pl.reciprocal(denom)
    o_ref[...] = (e * inv).astype(o_ref.dtype)


# ---------------------------------------------------------------------------
# Wrapper
# ---------------------------------------------------------------------------
# Below this (f32) byte count for x we take the single-block, single-HBM-pass
# path; x + exp(x) + output comfortably fit in a few MiB of VMEM.
_SINGLE_BLOCK_BYTES = 4 * 1024 * 1024


def softmax_stable(x, *, tn_max=512):
    """Pallas softmax_stable.  Columns are independent once the global max is
    known, so each (rows, TN) tile is fully self-contained."""
    assert x.ndim == 2, "kernel implements the 2-D case of the module's forward"
    rows, cols = x.shape
    itemsize = jnp.dtype(x.dtype).itemsize

    cost = pl.CostEstimate(
        flops=3 * rows * cols,                 # subtract + sum-adds + multiply
        transcendentals=rows * cols + cols,    # exp per element + recip per column
        bytes_accessed=2 * rows * cols * itemsize,
    )
    cparams = pltpu.CompilerParams(
        dimension_semantics=("parallel",),     # independent column tiles (2 TCs on v7x)
        vmem_limit_bytes=32 * 1024 * 1024,     # explicit budget, safe on v5e/v6e/v7x
    )

    # ---- fast path: whole array as one VMEM block, single HBM read of x ----
    if rows * cols * 4 <= _SINGLE_BLOCK_BYTES:
        return pl.pallas_call(
            _softmax_stable_single_kernel,
            out_shape=jax.ShapeDtypeStruct(x.shape, x.dtype),
            grid=(1,),
            in_specs=[pl.BlockSpec((rows, cols), lambda i: (0, 0))],
            out_specs=pl.BlockSpec((rows, cols), lambda i: (0, 0)),
            compiler_params=cparams,
            cost_estimate=cost,
        )(x)

    # ---- general path: lane-dense column tiles, hoisted global max ---------
    if cols % 128 == 0:
        tn = min(tn_max, cols)                 # lane-dense (multiple of 128)
    else:
        tn = cols                              # legal fallback: full last dim
    grid = (pl.cdiv(cols, tn),)

    # Global max computed once outside the kernel (tiny XLA reduction), passed
    # to the kernel as a scalar-prefetch SMEM value.
    gmax = jnp.max(x).astype(jnp.float32).reshape((1,))

    # TODO(synk): a very tall array (rows*tn*4B beyond the VMEM budget) would
    # need a two-pass / partial-sum scheme; the axis-0 denominator requires
    # full rows per tile, which is fine at the module's sizes.
    grid_spec = pltpu.PrefetchScalarGridSpec(
        num_scalar_prefetch=1,
        grid=grid,
        in_specs=[pl.BlockSpec((rows, tn), lambda j, gmax_ref: (0, j))],
        out_specs=pl.BlockSpec((rows, tn), lambda j, gmax_ref: (0, j)),
    )

    return pl.pallas_call(
        _softmax_stable_tiled_kernel,
        out_shape=jax.ShapeDtypeStruct(x.shape, x.dtype),
        grid_spec=grid_spec,
        compiler_params=cparams,
        cost_estimate=cost,
    )(gmax, x)


# ---------------------------------------------------------------------------
# Reference + self-test
# ---------------------------------------------------------------------------
def _reference(x):
    # Pure-JAX reference mirroring the PyTorch forward exactly.
    xf = x.astype(jnp.float32)
    m = jnp.max(xf)
    e = jnp.exp(xf - m)
    return (e / jnp.sum(e, axis=0, keepdims=True)).astype(x.dtype)


if __name__ == "__main__":
    key = jax.random.PRNGKey(0)
    k1, k2 = jax.random.split(key)

    # Original tiny module-scale case: seq=8, hidden=32 -> single-block fast path.
    x_small = jax.random.normal(k1, (8, 32), dtype=jnp.float32)
    # Large lane-dense case forcing the tiled path: 1024 x 2048 f32 (8 MiB > threshold).
    x_big = jax.random.normal(k2, (1024, 2048), dtype=jnp.float32)

    for x in (x_small, x_big):
        out = jax.block_until_ready(softmax_stable(x))
        ref = _reference(x)
        assert out.shape == x.shape and out.dtype == x.dtype
        assert jnp.allclose(out, ref, atol=1e-6, rtol=1e-6)

    print("KERNEL_OK")
</pallas_src>

<mosaic_0001>
module attributes {stable_mosaic.version = 11 : i64} {
  func.func @_softmax_stable_single_kernel(%arg0: i32, %arg1: memref<8x32xf32, #tpu.memory_space<vmem>>, %arg2: memref<8x32xf32, #tpu.memory_space<vmem>>) attributes {dimension_semantics = [#tpu.dimension_semantics<parallel>], iteration_bounds = array<i64: 1>, scalar_prefetch = 0 : i64, scratch_operands = 0 : i64, tpu.core_type = #tpu.core_type<tc>, window_params = [{pipeline_mode = #tpu.pipeline_mode<synchronous>, transform_indices = @transform_0, window_bounds = array<i64: 8, 32>}, {pipeline_mode = #tpu.pipeline_mode<synchronous>, transform_indices = @transform_1, window_bounds = array<i64: 8, 32>}]} {
    %c0 = arith.constant 0 : index
    %c0_0 = arith.constant 0 : index
    %0 = vector.load %arg1[%c0, %c0_0] : memref<8x32xf32, #tpu.memory_space<vmem>>, vector<8x32xf32>
    %1 = vector.shape_cast %0 : vector<8x32xf32> to vector<1x8x32xf32>
    %cst = arith.constant dense<0xFF800000> : vector<1xf32>
    %2 = vector.multi_reduction <maximumf>, %1, %cst [1, 2] : vector<1x8x32xf32> to vector<1xf32>
    %3 = vector.shape_cast %2 : vector<1xf32> to vector<1x1x1xf32>
    %4 = vector.extract %3[0, 0, 0] : f32 from vector<1x1x1xf32>
    %5 = vector.broadcast %4 : f32 to vector<8x32xf32>
    %6 = arith.subf %0, %5 : vector<8x32xf32>
    %7 = math.exp %6 : vector<8x32xf32>
    %cst_1 = arith.constant dense<0.000000e+00> : vector<32xf32>
    %8 = vector.multi_reduction <add>, %7, %cst_1 [0] : vector<8x32xf32> to vector<32xf32>
    %9 = vector.shape_cast %8 : vector<32xf32> to vector<1x32xf32>
    %10 = tpu.reciprocal %9 : vector<1x32xf32> -> vector<1x32xf32>
    %11 = vector.broadcast %10 : vector<1x32xf32> to vector<8x32xf32>
    %12 = arith.mulf %7, %11 : vector<8x32xf32>
    %c0_2 = arith.constant 0 : index
    %c0_3 = arith.constant 0 : index
    %13 = vector.load %arg2[%c0_2, %c0_3] : memref<8x32xf32, #tpu.memory_space<vmem>>, vector<8x32xf32>
    tpu.vector_store %arg2[%c0_2, %c0_3], %12 {strides = array<i32>} : memref<8x32xf32, #tpu.memory_space<vmem>>, vector<8x32xf32>,
    return
  }
  func.func @transform_0(%arg0: i32) -> (i32, i32) {
    %c0_i32 = arith.constant 0 : i32
    %c0_i32_0 = arith.constant 0 : i32
    %c0_i32_1 = arith.constant 0 : i32
    return %c0_i32, %c0_i32_0 : i32, i32
  }
  func.func @transform_1(%arg0: i32) -> (i32, i32) {
    %c0_i32 = arith.constant 0 : i32
    %c0_i32_0 = arith.constant 0 : i32
    %c0_i32_1 = arith.constant 0 : i32
    return %c0_i32, %c0_i32_0 : i32, i32
  }
}

</mosaic_0001>

<llo_original>
// kernel: tpu_custom_call.1
$region0: #{tpu_custom_call.1}
  #allocation0 [shape = 'u32[]', space=smem, size = 0x4, offset = 0x4, fixed_abs, tag = 'smem constant byte address 0x4 - core index']
  #allocation1 [shape = 'u32[144,128]{1,0:T(1,128)}', space=vmem, size = 0x12000, scoped, tag = 'internal scratch']
  %s0 = inlined_call_operand.hbm [shape: f32[8,32], index: 0, kind: input, shape index: {}]
  %s1 = inlined_call_operand.hbm [shape: f32[8,32], index: 1, kind: output, shape index: {}]
  %s2 = sld [smem:[#allocation0]]
  $region18: #{tpu_custom_call.1} parent=0
    _
  %s4 = ssub.s32 1, %s2
  %s5 = scalar_select 0, %s4, %s2
  $region1: #{tpu_custom_call.1} parent=0
    #allocation2 [shape = 'u8[4096]{0}', space=vmem, size = 0x1000, scoped, tag = 'input window, operand 0, single buffered']
    #allocation3 [shape = 's32[1]{0}', space=sflag, size = 0x4, scoped, tag = 'scoped memory for tpu_custom_call.1']
    #allocation4 [shape = 's32[1]{0}', space=sflag, size = 0x4, scoped, tag = 'scoped memory for tpu_custom_call.1']
    #allocation5 [shape = 'u8[4096]{0}', space=vmem, size = 0x1000, scoped, tag = 'output window, operand 0, single buffered']
    %6 = vsyncpa [#allocation3], 0
    %7 = vsyncpa [#allocation4], 0
    // Predicated region
    $region2: #{tpu_custom_call.1} parent=1 // pred_check
      _
    $region3: #{tpu_custom_call.1} parent=1 // pred_check_branch
      %9 = sbr.rel (0) target = $region5
    $region4: #{tpu_custom_call.1} parent=1 // pred_region
      %s11 = ssub.s32 128, 128
      %12 = vsyncadd [#allocation3], %s11
      %s14 = sshll.u32 [#allocation2], 4
      %s15 = int_to_ptr.vmem [resolvable:$true] %s14
      %17 = dma.hbm_to_vmem [thread:$0]  %s0, 128, %s15, [#allocation3]
    $region5: #{tpu_custom_call.1} parent=1 // pred_fallthru
      _
    // Predicated region
    $region6: #{tpu_custom_call.1} parent=1 // pred_check
      _
    $region7: #{tpu_custom_call.1} parent=1 // pred_check_branch
      %19 = sbr.rel (0) target = $region9
    $region8: #{tpu_custom_call.1} parent=1 // pred_region
      %20 = dma.done [#allocation3], 128
    $region9: #{tpu_custom_call.1} parent=1 // pred_fallthru
      _
    %v21 = vld [vmem:[#allocation2] sm:$0xff]
    %vm22 = vcmask 261120
    %v23 = vsel %vm22, %v21, -inf
    %24 = vmax.xlane.f32.xlu0 %v23
    %v25 = vpop.xlane.xlu0 %24
    %v26 = vrot.slane %v25, 4
    %v27 = vmax.f32 %v25, %v26
    %v28 = vrot.slane %v27, 2
    %v29 = vmax.f32 %v27, %v28
    %v30 = vrot.slane %v29, 1
    %v31 = vmax.f32 %v29, %v30
    %s32 = vtos %v31
    %v33 = vstv %s32
    %v34 = vsub.f32 %v21, %v33
    %v35 = vmul.f32 %v34, 1.442695
    %v36 = vpow.pop %v35
    %v37 = vsel %vm22, %v36, 0.0
    %v38 = vrot.slane %v37, 4
    %v39 = vadd.f32 %v37, %v38
    %v40 = vrot.slane %v39, 2
    %v41 = vadd.f32 %v39, %v40
    %v42 = vrot.slane %v41, 1
    %v43 = vadd.f32 %v41, %v42
    %v44 = vrcp.pop %v43
    %v45 = vmul.f32 %v36, %v44
    %46 = vst.msk [vmem:[#allocation5] sm:$0xff] %vm22, %v45
    // Predicated region
    $region10: #{tpu_custom_call.1} parent=1 // pred_check
      _
    $region11: #{tpu_custom_call.1} parent=1 // pred_check_branch
      %48 = sbr.rel (0) target = $region13
    $region12: #{tpu_custom_call.1} parent=1 // pred_region
      %s50 = ssub.s32 128, 128
      %51 = vsyncadd [#allocation4], %s50
      %s53 = sshll.u32 [#allocation5], 4
      %s54 = int_to_ptr.vmem [resolvable:$true] %s53
      %56 = dma.vmem_to_hbm [thread:$0]  %s54, 128, %s1, [#allocation4]
    $region13: #{tpu_custom_call.1} parent=1 // pred_fallthru
      _
    // Predicated region
    $region14: #{tpu_custom_call.1} parent=1 // pred_check
      _
    $region15: #{tpu_custom_call.1} parent=1 // pred_check_branch
      %58 = sbr.rel (0) target = $region17
    $region16: #{tpu_custom_call.1} parent=1 // pred_region
      %59 = dma.done [#allocation4], 128
    $region17: #{tpu_custom_call.1} parent=1 // pred_fallthru
      _
    %60 = vsyncpa [#allocation3], 1
    %61 = vsyncpa [#allocation4], 1

</llo_original>
